<compile_context>
chip_gen: v5e
topology: v5e:2x2
jax: 0.10.0
libtpu: 0.0.40
codegen_flags: <defaults>
</compile_context>

<pallas_src>
import jax
import jax.numpy as jnp
from jax.experimental import pallas as pl
from jax.experimental.pallas import tpu as pltpu


def encoder_kernel(x_ref, wih_ref, bias_ref, whh_ref,
                   w1_ref, b1_ref, w2_ref, b2_ref,
                   out_ref, hid_ref):
    """One batch tile: input projection + serial RNN recurrence + MLP head.

    x_ref   : (S, Bt, E)       time-major embedded input tile
    wih_ref : (E, H_enc)       W_ih^T
    bias_ref: (1, H_enc)       b_ih + b_hh (pre-folded)
    whh_ref : (H_enc, H_enc)   W_hh^T
    w1_ref  : (H_enc, H_enc)   W1^T       b1_ref: (1, H_enc)
    w2_ref  : (H_enc, H_dec)   W2^T       b2_ref: (1, H_dec)
    out_ref : (S, Bt, H_enc)   per-step RNN outputs (time-major)
    hid_ref : (Bt, H_dec)      tanh(linear2(relu(linear1(h_last))))
    """
    S, Bt, E = x_ref.shape
    H = whh_ref.shape[0]

    # ---- time-parallel input projection, hoisted off the serial chain ------
    # One MXU matmul for the whole tile; relayout from the flatten/unflatten is
    # not on the recurrence critical path.  Result kept time-major so xp[t] is
    # a contiguous (Bt, H) slab.
    xp = (jnp.dot(x_ref[...].reshape(S * Bt, E), wih_ref[...],
                  preferred_element_type=jnp.float32)
          + bias_ref[...]).reshape(S, Bt, H)

    whh = whh_ref[...]

    # ---- serial recurrence: exactly one matmul + tanh per step --------------
    # Fully unrolled (S is small & static) -> single basic block, full LLO
    # scheduling visibility.  Per-step store is a leading-index slab: no
    # reshape, no masked (B,1,32) sub-tile store.
    h = jnp.zeros((Bt, H), jnp.float32)
    for t in range(S):
        h = jnp.tanh(xp[t] + jnp.dot(h, whh, preferred_element_type=jnp.float32))
        out_ref[t] = h.astype(out_ref.dtype)

    # ---- MLP head on the last hidden state ----------------------------------
    z = jnp.maximum(
        jnp.dot(h, w1_ref[...], preferred_element_type=jnp.float32) + b1_ref[...],
        0.0)
    h2 = jnp.dot(z, w2_ref[...], preferred_element_type=jnp.float32) + b2_ref[...]
    hid_ref[...] = jnp.tanh(h2).astype(hid_ref.dtype)


def encoder_forward(tokens, params, *, b_tile=None):
    """tokens: (batch, seq_len) int32.  Returns (output, hidden) matching PyTorch:
       output: (batch, seq_len, enc_hidden), hidden: (1, batch, dec_hidden)."""
    emb_table = params["embedding"]           # (vocab, E)
    w_ih = params["w_ih"]                     # (H_enc, E)   (PyTorch layout)
    w_hh = params["w_hh"]                     # (H_enc, H_enc)
    b_ih = params["b_ih"]                     # (H_enc,)
    b_hh = params["b_hh"]                     # (H_enc,)
    w1 = params["w1"]                         # (H_enc, H_enc)
    b1 = params["b1"]                         # (H_enc,)
    w2 = params["w2"]                         # (H_dec, H_enc)
    b2 = params["b2"]                         # (H_dec,)

    B, S = tokens.shape
    E = emb_table.shape[1]
    H_enc = w_ih.shape[0]
    H_dec = w2.shape[0]

    # --- glue: embedding lookup + dropout(identity, eval mode) ---------------
    embed = jnp.take(emb_table, tokens, axis=0).astype(jnp.float32)   # (B, S, E)
    # Time-major for the kernel: XLA transpose on the HBM array so per-step
    # reads/stores inside the kernel are contiguous leading-index slabs.
    embed_tm = jnp.transpose(embed, (1, 0, 2))                        # (S, B, E)

    # kernel-friendly (input-major) weight layouts; biases folded / 2-D
    wih_k = w_ih.T                                    # (E, H_enc)
    whh_k = w_hh.T                                    # (H_enc, H_enc)
    bias_k = (b_ih + b_hh).reshape(1, H_enc)          # folded recurrence bias
    w1_k = w1.T                                       # (H_enc, H_enc)
    b1_k = b1.reshape(1, H_enc)
    w2_k = w2.T                                       # (H_enc, H_dec)
    b2_k = b2.reshape(1, H_dec)

    # --- batch tiling ---------------------------------------------------------
    # Batch rows are independent, so the grid axis is "parallel" (shards across
    # both TensorCores on v7x).  Per-buffer footprint = S*Bt*(E+H_enc)*4 B,
    # double-buffered; with Bt <= 128 this sits well inside the default scoped
    # VMEM limit on v5e (16 MiB), v6e (32 MiB) and v7x (32/64 MiB).
    if b_tile is None:
        b_tile = 128 if (B > 128 and B % 128 == 0) else B
    grid = (pl.cdiv(B, b_tile),)

    out_tm, hid = pl.pallas_call(
        encoder_kernel,
        out_shape=(
            jax.ShapeDtypeStruct((S, B, H_enc), jnp.float32),
            jax.ShapeDtypeStruct((B, H_dec), jnp.float32),
        ),
        grid_spec=pltpu.PrefetchScalarGridSpec(
            num_scalar_prefetch=0,
            grid=grid,
            in_specs=[
                pl.BlockSpec((S, b_tile, E), lambda b: (0, b, 0)),      # x (time-major)
                pl.BlockSpec((E, H_enc), lambda b: (0, 0)),             # W_ih^T
                pl.BlockSpec((1, H_enc), lambda b: (0, 0)),             # folded bias
                pl.BlockSpec((H_enc, H_enc), lambda b: (0, 0)),         # W_hh^T
                pl.BlockSpec((H_enc, H_enc), lambda b: (0, 0)),         # W1^T
                pl.BlockSpec((1, H_enc), lambda b: (0, 0)),             # b1
                pl.BlockSpec((H_enc, H_dec), lambda b: (0, 0)),         # W2^T
                pl.BlockSpec((1, H_dec), lambda b: (0, 0)),             # b2
            ],
            out_specs=(
                pl.BlockSpec((S, b_tile, H_enc), lambda b: (0, b, 0)),  # outputs (time-major)
                pl.BlockSpec((b_tile, H_dec), lambda b: (b, 0)),        # MLP'd hidden
            ),
        ),
        compiler_params=pltpu.CompilerParams(
            dimension_semantics=("parallel",)),
    )(embed_tm, wih_k, bias_k, whh_k, w1_k, b1_k, w2_k, b2_k)

    output = jnp.transpose(out_tm, (1, 0, 2))         # back to (B, S, H_enc)
    hidden = hid.reshape(1, B, H_dec)                 # (1, B, H_dec)
    return output, hidden


def reference_forward(tokens, params):
    """Pure-JAX reference (mirrors the PyTorch forward) for a correctness check."""
    embed = jnp.take(params["embedding"], tokens, axis=0)  # (B, S, E)
    B, S, _ = embed.shape
    H_enc = params["w_ih"].shape[0]
    h = jnp.zeros((B, H_enc), jnp.float32)
    outs = []
    for t in range(S):
        h = jnp.tanh(embed[:, t] @ params["w_ih"].T + params["b_ih"]
                     + h @ params["w_hh"].T + params["b_hh"])
        outs.append(h)
    output = jnp.stack(outs, axis=1)
    z = jnp.maximum(h @ params["w1"].T + params["b1"], 0.0)
    hidden = jnp.tanh(z @ params["w2"].T + params["b2"])
    return output, hidden.reshape(1, B, -1)


if __name__ == "__main__":
    # small shapes consistent with the module
    vocab_size = 16       # input_size
    emb_size = 32
    enc_hidden = 32
    dec_hidden = 32
    batch = 2
    seq_len = 8

    key = jax.random.PRNGKey(0)
    ks = jax.random.split(key, 10)
    scale = 0.1
    params = {
        "embedding": scale * jax.random.normal(ks[0], (vocab_size, emb_size), jnp.float32),
        "w_ih": scale * jax.random.normal(ks[1], (enc_hidden, emb_size), jnp.float32),
        "w_hh": scale * jax.random.normal(ks[2], (enc_hidden, enc_hidden), jnp.float32),
        "b_ih": scale * jax.random.normal(ks[3], (enc_hidden,), jnp.float32),
        "b_hh": scale * jax.random.normal(ks[4], (enc_hidden,), jnp.float32),
        "w1": scale * jax.random.normal(ks[5], (enc_hidden, enc_hidden), jnp.float32),
        "b1": scale * jax.random.normal(ks[6], (enc_hidden,), jnp.float32),
        "w2": scale * jax.random.normal(ks[7], (dec_hidden, enc_hidden), jnp.float32),
        "b2": scale * jax.random.normal(ks[8], (dec_hidden,), jnp.float32),
    }
    tokens = jax.random.randint(ks[9], (batch, seq_len), 0, vocab_size, jnp.int32)

    output, hidden = jax.block_until_ready(encoder_forward(tokens, params))
    ref_out, ref_hid = reference_forward(tokens, params)

    assert output.shape == (batch, seq_len, enc_hidden)
    assert hidden.shape == (1, batch, dec_hidden)
    assert jnp.allclose(output, ref_out, atol=1e-5, rtol=1e-5)
    assert jnp.allclose(hidden, ref_hid, atol=1e-5, rtol=1e-5)

    print("KERNEL_OK")
</pallas_src>

<mosaic_0001>
module attributes {stable_mosaic.version = 11 : i64} {
  func.func @encoder_kernel(%arg0: i32, %arg1: memref<8x2x32xf32, #tpu.memory_space<vmem>>, %arg2: memref<32x32xf32, #tpu.memory_space<vmem>>, %arg3: memref<1x32xf32, #tpu.memory_space<vmem>>, %arg4: memref<32x32xf32, #tpu.memory_space<vmem>>, %arg5: memref<32x32xf32, #tpu.memory_space<vmem>>, %arg6: memref<1x32xf32, #tpu.memory_space<vmem>>, %arg7: memref<32x32xf32, #tpu.memory_space<vmem>>, %arg8: memref<1x32xf32, #tpu.memory_space<vmem>>, %arg9: memref<8x2x32xf32, #tpu.memory_space<vmem>>, %arg10: memref<2x32xf32, #tpu.memory_space<vmem>>) attributes {dimension_semantics = [#tpu.dimension_semantics<parallel>], iteration_bounds = array<i64: 1>, scalar_prefetch = 0 : i64, scratch_operands = 0 : i64, tpu.core_type = #tpu.core_type<tc>, window_params = [{transform_indices = @transform_0, window_bounds = array<i64: 8, 2, 32>}, {pipeline_mode = #tpu.pipeline_mode<synchronous>, transform_indices = @transform_1, window_bounds = array<i64: 32, 32>}, {pipeline_mode = #tpu.pipeline_mode<synchronous>, transform_indices = @transform_2, window_bounds = array<i64: 1, 32>}, {pipeline_mode = #tpu.pipeline_mode<synchronous>, transform_indices = @transform_3, window_bounds = array<i64: 32, 32>}, {pipeline_mode = #tpu.pipeline_mode<synchronous>, transform_indices = @transform_4, window_bounds = array<i64: 32, 32>}, {pipeline_mode = #tpu.pipeline_mode<synchronous>, transform_indices = @transform_5, window_bounds = array<i64: 1, 32>}, {pipeline_mode = #tpu.pipeline_mode<synchronous>, transform_indices = @transform_6, window_bounds = array<i64: 32, 32>}, {pipeline_mode = #tpu.pipeline_mode<synchronous>, transform_indices = @transform_7, window_bounds = array<i64: 1, 32>}, {transform_indices = @transform_8, window_bounds = array<i64: 8, 2, 32>}, {transform_indices = @transform_9, window_bounds = array<i64: 2, 32>}]} {
    %c0 = arith.constant 0 : index
    %c0_0 = arith.constant 0 : index
    %c0_1 = arith.constant 0 : index
    %0 = vector.load %arg1[%c0, %c0_0, %c0_1] : memref<8x2x32xf32, #tpu.memory_space<vmem>>, vector<8x2x32xf32>
    %1 = vector.shape_cast %0 : vector<8x2x32xf32> to vector<16x32xf32>
    %c0_2 = arith.constant 0 : index
    %c0_3 = arith.constant 0 : index
    %2 = vector.load %arg2[%c0_2, %c0_3] : memref<32x32xf32, #tpu.memory_space<vmem>>, vector<32x32xf32>
    %cst = arith.constant dense<0.000000e+00> : vector<16x32xf32>
    %3 = tpu.matmul %1, %2, %cst {dimension_numbers = #tpu.dot_dimension_numbers<[1], [0], [0], [1], [0, 0, 1, 1], [], []>} : vector<16x32xf32>, vector<32x32xf32>, vector<16x32xf32> -> vector<16x32xf32>
    %c0_4 = arith.constant 0 : index
    %c0_5 = arith.constant 0 : index
    %4 = vector.load %arg3[%c0_4, %c0_5] : memref<1x32xf32, #tpu.memory_space<vmem>>, vector<1x32xf32>
    %5 = vector.broadcast %4 : vector<1x32xf32> to vector<16x32xf32>
    %6 = arith.addf %3, %5 : vector<16x32xf32>
    %7 = vector.shape_cast %6 : vector<16x32xf32> to vector<8x2x32xf32>
    %c0_6 = arith.constant 0 : index
    %c0_7 = arith.constant 0 : index
    %8 = vector.load %arg4[%c0_6, %c0_7] : memref<32x32xf32, #tpu.memory_space<vmem>>, vector<32x32xf32>
    %cst_8 = arith.constant 0.000000e+00 : f32
    %9 = vector.broadcast %cst_8 : f32 to vector<2x32xf32>
    %10 = vector.extract_strided_slice %7 {offsets = [0, 0, 0], sizes = [1, 2, 32], strides = [1, 1, 1]} : vector<8x2x32xf32> to vector<1x2x32xf32>
    %11 = vector.shape_cast %10 : vector<1x2x32xf32> to vector<2x32xf32>
    %cst_9 = arith.constant dense<0.000000e+00> : vector<2x32xf32>
    %12 = tpu.matmul %9, %8, %cst_9 {dimension_numbers = #tpu.dot_dimension_numbers<[1], [0], [0], [1], [0, 0, 1, 1], [], []>} : vector<2x32xf32>, vector<32x32xf32>, vector<2x32xf32> -> vector<2x32xf32>
    %13 = arith.addf %11, %12 : vector<2x32xf32>
    %14 = math.tanh %13 : vector<2x32xf32>
    %c0_10 = arith.constant 0 : index
    %c0_11 = arith.constant 0 : index
    %c0_12 = arith.constant 0 : index
    %15 = vector.load %arg9[%c0_10, %c0_11, %c0_12] : memref<8x2x32xf32, #tpu.memory_space<vmem>>, vector<1x2x32xf32>
    %16 = vector.shape_cast %15 : vector<1x2x32xf32> to vector<2x32xf32>
    %17 = vector.shape_cast %14 : vector<2x32xf32> to vector<1x2x32xf32>
    tpu.vector_store %arg9[%c0_10, %c0_11, %c0_12], %17 {strides = array<i32>} : memref<8x2x32xf32, #tpu.memory_space<vmem>>, vector<1x2x32xf32>,
    %18 = vector.extract_strided_slice %7 {offsets = [1, 0, 0], sizes = [1, 2, 32], strides = [1, 1, 1]} : vector<8x2x32xf32> to vector<1x2x32xf32>
    %19 = vector.shape_cast %18 : vector<1x2x32xf32> to vector<2x32xf32>
    %cst_13 = arith.constant dense<0.000000e+00> : vector<2x32xf32>
    %20 = tpu.matmul %14, %8, %cst_13 {dimension_numbers = #tpu.dot_dimension_numbers<[1], [0], [0], [1], [0, 0, 1, 1], [], []>} : vector<2x32xf32>, vector<32x32xf32>, vector<2x32xf32> -> vector<2x32xf32>
    %21 = arith.addf %19, %20 : vector<2x32xf32>
    %22 = math.tanh %21 : vector<2x32xf32>
    %c1 = arith.constant 1 : index
    %c0_14 = arith.constant 0 : index
    %c0_15 = arith.constant 0 : index
    %23 = vector.load %arg9[%c1, %c0_14, %c0_15] : memref<8x2x32xf32, #tpu.memory_space<vmem>>, vector<1x2x32xf32>
    %24 = vector.shape_cast %23 : vector<1x2x32xf32> to vector<2x32xf32>
    %25 = vector.shape_cast %22 : vector<2x32xf32> to vector<1x2x32xf32>
    tpu.vector_store %arg9[%c1, %c0_14, %c0_15], %25 {strides = array<i32>} : memref<8x2x32xf32, #tpu.memory_space<vmem>>, vector<1x2x32xf32>,
    %26 = vector.extract_strided_slice %7 {offsets = [2, 0, 0], sizes = [1, 2, 32], strides = [1, 1, 1]} : vector<8x2x32xf32> to vector<1x2x32xf32>
    %27 = vector.shape_cast %26 : vector<1x2x32xf32> to vector<2x32xf32>
    %cst_16 = arith.constant dense<0.000000e+00> : vector<2x32xf32>
    %28 = tpu.matmul %22, %8, %cst_16 {dimension_numbers = #tpu.dot_dimension_numbers<[1], [0], [0], [1], [0, 0, 1, 1], [], []>} : vector<2x32xf32>, vector<32x32xf32>, vector<2x32xf32> -> vector<2x32xf32>
    %29 = arith.addf %27, %28 : vector<2x32xf32>
    %30 = math.tanh %29 : vector<2x32xf32>
    %c2 = arith.constant 2 : index
    %c0_17 = arith.constant 0 : index
    %c0_18 = arith.constant 0 : index
    %31 = vector.load %arg9[%c2, %c0_17, %c0_18] : memref<8x2x32xf32, #tpu.memory_space<vmem>>, vector<1x2x32xf32>
    %32 = vector.shape_cast %31 : vector<1x2x32xf32> to vector<2x32xf32>
    %33 = vector.shape_cast %30 : vector<2x32xf32> to vector<1x2x32xf32>
    tpu.vector_store %arg9[%c2, %c0_17, %c0_18], %33 {strides = array<i32>} : memref<8x2x32xf32, #tpu.memory_space<vmem>>, vector<1x2x32xf32>,
    %34 = vector.extract_strided_slice %7 {offsets = [3, 0, 0], sizes = [1, 2, 32], strides = [1, 1, 1]} : vector<8x2x32xf32> to vector<1x2x32xf32>
    %35 = vector.shape_cast %34 : vector<1x2x32xf32> to vector<2x32xf32>
    %cst_19 = arith.constant dense<0.000000e+00> : vector<2x32xf32>
    %36 = tpu.matmul %30, %8, %cst_19 {dimension_numbers = #tpu.dot_dimension_numbers<[1], [0], [0], [1], [0, 0, 1, 1], [], []>} : vector<2x32xf32>, vector<32x32xf32>, vector<2x32xf32> -> vector<2x32xf32>
    %37 = arith.addf %35, %36 : vector<2x32xf32>
    %38 = math.tanh %37 : vector<2x32xf32>
    %c3 = arith.constant 3 : index
    %c0_20 = arith.constant 0 : index
    %c0_21 = arith.constant 0 : index
    %39 = vector.load %arg9[%c3, %c0_20, %c0_21] : memref<8x2x32xf32, #tpu.memory_space<vmem>>, vector<1x2x32xf32>
    %40 = vector.shape_cast %39 : vector<1x2x32xf32> to vector<2x32xf32>
    %41 = vector.shape_cast %38 : vector<2x32xf32> to vector<1x2x32xf32>
    tpu.vector_store %arg9[%c3, %c0_20, %c0_21], %41 {strides = array<i32>} : memref<8x2x32xf32, #tpu.memory_space<vmem>>, vector<1x2x32xf32>,
    %42 = vector.extract_strided_slice %7 {offsets = [4, 0, 0], sizes = [1, 2, 32], strides = [1, 1, 1]} : vector<8x2x32xf32> to vector<1x2x32xf32>
    %43 = vector.shape_cast %42 : vector<1x2x32xf32> to vector<2x32xf32>
    %cst_22 = arith.constant dense<0.000000e+00> : vector<2x32xf32>
    %44 = tpu.matmul %38, %8, %cst_22 {dimension_numbers = #tpu.dot_dimension_numbers<[1], [0], [0], [1], [0, 0, 1, 1], [], []>} : vector<2x32xf32>, vector<32x32xf32>, vector<2x32xf32> -> vector<2x32xf32>
    %45 = arith.addf %43, %44 : vector<2x32xf32>
    %46 = math.tanh %45 : vector<2x32xf32>
    %c4 = arith.constant 4 : index
    %c0_23 = arith.constant 0 : index
    %c0_24 = arith.constant 0 : index
    %47 = vector.load %arg9[%c4, %c0_23, %c0_24] : memref<8x2x32xf32, #tpu.memory_space<vmem>>, vector<1x2x32xf32>
    %48 = vector.shape_cast %47 : vector<1x2x32xf32> to vector<2x32xf32>
    %49 = vector.shape_cast %46 : vector<2x32xf32> to vector<1x2x32xf32>
    tpu.vector_store %arg9[%c4, %c0_23, %c0_24], %49 {strides = array<i32>} : memref<8x2x32xf32, #tpu.memory_space<vmem>>, vector<1x2x32xf32>,
    %50 = vector.extract_strided_slice %7 {offsets = [5, 0, 0], sizes = [1, 2, 32], strides = [1, 1, 1]} : vector<8x2x32xf32> to vector<1x2x32xf32>
    %51 = vector.shape_cast %50 : vector<1x2x32xf32> to vector<2x32xf32>
    %cst_25 = arith.constant dense<0.000000e+00> : vector<2x32xf32>
    %52 = tpu.matmul %46, %8, %cst_25 {dimension_numbers = #tpu.dot_dimension_numbers<[1], [0], [0], [1], [0, 0, 1, 1], [], []>} : vector<2x32xf32>, vector<32x32xf32>, vector<2x32xf32> -> vector<2x32xf32>
    %53 = arith.addf %51, %52 : vector<2x32xf32>
    %54 = math.tanh %53 : vector<2x32xf32>
    %c5 = arith.constant 5 : index
    %c0_26 = arith.constant 0 : index
    %c0_27 = arith.constant 0 : index
    %55 = vector.load %arg9[%c5, %c0_26, %c0_27] : memref<8x2x32xf32, #tpu.memory_space<vmem>>, vector<1x2x32xf32>
    %56 = vector.shape_cast %55 : vector<1x2x32xf32> to vector<2x32xf32>
    %57 = vector.shape_cast %54 : vector<2x32xf32> to vector<1x2x32xf32>
    tpu.vector_store %arg9[%c5, %c0_26, %c0_27], %57 {strides = array<i32>} : memref<8x2x32xf32, #tpu.memory_space<vmem>>, vector<1x2x32xf32>,
    %58 = vector.extract_strided_slice %7 {offsets = [6, 0, 0], sizes = [1, 2, 32], strides = [1, 1, 1]} : vector<8x2x32xf32> to vector<1x2x32xf32>
    %59 = vector.shape_cast %58 : vector<1x2x32xf32> to vector<2x32xf32>
    %cst_28 = arith.constant dense<0.000000e+00> : vector<2x32xf32>
    %60 = tpu.matmul %54, %8, %cst_28 {dimension_numbers = #tpu.dot_dimension_numbers<[1], [0], [0], [1], [0, 0, 1, 1], [], []>} : vector<2x32xf32>, vector<32x32xf32>, vector<2x32xf32> -> vector<2x32xf32>
    %61 = arith.addf %59, %60 : vector<2x32xf32>
    %62 = math.tanh %61 : vector<2x32xf32>
    %c6 = arith.constant 6 : index
    %c0_29 = arith.constant 0 : index
    %c0_30 = arith.constant 0 : index
    %63 = vector.load %arg9[%c6, %c0_29, %c0_30] : memref<8x2x32xf32, #tpu.memory_space<vmem>>, vector<1x2x32xf32>
    %64 = vector.shape_cast %63 : vector<1x2x32xf32> to vector<2x32xf32>
    %65 = vector.shape_cast %62 : vector<2x32xf32> to vector<1x2x32xf32>
    tpu.vector_store %arg9[%c6, %c0_29, %c0_30], %65 {strides = array<i32>} : memref<8x2x32xf32, #tpu.memory_space<vmem>>, vector<1x2x32xf32>,
    %66 = vector.extract_strided_slice %7 {offsets = [7, 0, 0], sizes = [1, 2, 32], strides = [1, 1, 1]} : vector<8x2x32xf32> to vector<1x2x32xf32>
    %67 = vector.shape_cast %66 : vector<1x2x32xf32> to vector<2x32xf32>
    %cst_31 = arith.constant dense<0.000000e+00> : vector<2x32xf32>
    %68 = tpu.matmul %62, %8, %cst_31 {dimension_numbers = #tpu.dot_dimension_numbers<[1], [0], [0], [1], [0, 0, 1, 1], [], []>} : vector<2x32xf32>, vector<32x32xf32>, vector<2x32xf32> -> vector<2x32xf32>
    %69 = arith.addf %67, %68 : vector<2x32xf32>
    %70 = math.tanh %69 : vector<2x32xf32>
    %c7 = arith.constant 7 : index
    %c0_32 = arith.constant 0 : index
    %c0_33 = arith.constant 0 : index
    %71 = vector.load %arg9[%c7, %c0_32, %c0_33] : memref<8x2x32xf32, #tpu.memory_space<vmem>>, vector<1x2x32xf32>
    %72 = vector.shape_cast %71 : vector<1x2x32xf32> to vector<2x32xf32>
    %73 = vector.shape_cast %70 : vector<2x32xf32> to vector<1x2x32xf32>
    tpu.vector_store %arg9[%c7, %c0_32, %c0_33], %73 {strides = array<i32>} : memref<8x2x32xf32, #tpu.memory_space<vmem>>, vector<1x2x32xf32>,
    %c0_34 = arith.constant 0 : index
    %c0_35 = arith.constant 0 : index
    %74 = vector.load %arg5[%c0_34, %c0_35] : memref<32x32xf32, #tpu.memory_space<vmem>>, vector<32x32xf32>
    %cst_36 = arith.constant dense<0.000000e+00> : vector<2x32xf32>
    %75 = tpu.matmul %70, %74, %cst_36 {dimension_numbers = #tpu.dot_dimension_numbers<[1], [0], [0], [1], [0, 0, 1, 1], [], []>} : vector<2x32xf32>, vector<32x32xf32>, vector<2x32xf32> -> vector<2x32xf32>
    %c0_37 = arith.constant 0 : index
    %c0_38 = arith.constant 0 : index
    %76 = vector.load %arg6[%c0_37, %c0_38] : memref<1x32xf32, #tpu.memory_space<vmem>>, vector<1x32xf32>
    %77 = vector.broadcast %76 : vector<1x32xf32> to vector<2x32xf32>
    %78 = arith.addf %75, %77 : vector<2x32xf32>
    %cst_39 = arith.constant 0.000000e+00 : f32
    %79 = vector.broadcast %cst_39 : f32 to vector<2x32xf32>
    %80 = arith.maximumf %78, %79 : vector<2x32xf32>
    %c0_40 = arith.constant 0 : index
    %c0_41 = arith.constant 0 : index
    %81 = vector.load %arg7[%c0_40, %c0_41] : memref<32x32xf32, #tpu.memory_space<vmem>>, vector<32x32xf32>
    %cst_42 = arith.constant dense<0.000000e+00> : vector<2x32xf32>
    %82 = tpu.matmul %80, %81, %cst_42 {dimension_numbers = #tpu.dot_dimension_numbers<[1], [0], [0], [1], [0, 0, 1, 1], [], []>} : vector<2x32xf32>, vector<32x32xf32>, vector<2x32xf32> -> vector<2x32xf32>
    %c0_43 = arith.constant 0 : index
    %c0_44 = arith.constant 0 : index
    %83 = vector.load %arg8[%c0_43, %c0_44] : memref<1x32xf32, #tpu.memory_space<vmem>>, vector<1x32xf32>
    %84 = vector.broadcast %83 : vector<1x32xf32> to vector<2x32xf32>
    %85 = arith.addf %82, %84 : vector<2x32xf32>
    %86 = math.tanh %85 : vector<2x32xf32>
    %c0_45 = arith.constant 0 : index
    %c0_46 = arith.constant 0 : index
    %87 = vector.load %arg10[%c0_45, %c0_46] : memref<2x32xf32, #tpu.memory_space<vmem>>, vector<2x32xf32>
    tpu.vector_store %arg10[%c0_45, %c0_46], %86 {strides = array<i32>} : memref<2x32xf32, #tpu.memory_space<vmem>>, vector<2x32xf32>,
    return
  }
  func.func @transform_0(%arg0: i32) -> (i32, i32, i32) {
    %c0_i32 = arith.constant 0 : i32
    %c0_i32_0 = arith.constant 0 : i32
    %c0_i32_1 = arith.constant 0 : i32
    return %c0_i32, %arg0, %c0_i32_0 : i32, i32, i32
  }
  func.func @transform_1(%arg0: i32) -> (i32, i32) {
    %c0_i32 = arith.constant 0 : i32
    %c0_i32_0 = arith.constant 0 : i32
    %c0_i32_1 = arith.constant 0 : i32
    return %c0_i32, %c0_i32_0 : i32, i32
  }
  func.func @transform_2(%arg0: i32) -> (i32, i32) {
    %c0_i32 = arith.constant 0 : i32
    %c0_i32_0 = arith.constant 0 : i32
    %c0_i32_1 = arith.constant 0 : i32
    return %c0_i32, %c0_i32_0 : i32, i32
  }
  func.func @transform_3(%arg0: i32) -> (i32, i32) {
    %c0_i32 = arith.constant 0 : i32
    %c0_i32_0 = arith.constant 0 : i32
    %c0_i32_1 = arith.constant 0 : i32
    return %c0_i32, %c0_i32_0 : i32, i32
  }
  func.func @transform_4(%arg0: i32) -> (i32, i32) {
    %c0_i32 = arith.constant 0 : i32
    %c0_i32_0 = arith.constant 0 : i32
    %c0_i32_1 = arith.constant 0 : i32
    return %c0_i32, %c0_i32_0 : i32, i32
  }
  func.func @transform_5(%arg0: i32) -> (i32, i32) {
    %c0_i32 = arith.constant 0 : i32
    %c0_i32_0 = arith.constant 0 : i32
    %c0_i32_1 = arith.constant 0 : i32
    return %c0_i32, %c0_i32_0 : i32, i32
  }
  func.func @transform_6(%arg0: i32) -> (i32, i32) {
    %c0_i32 = arith.constant 0 : i32
    %c0_i32_0 = arith.constant 0 : i32
    %c0_i32_1 = arith.constant 0 : i32
    return %c0_i32, %c0_i32_0 : i32, i32
  }
  func.func @transform_7(%arg0: i32) -> (i32, i32) {
    %c0_i32 = arith.constant 0 : i32
    %c0_i32_0 = arith.constant 0 : i32
    %c0_i32_1 = arith.constant 0 : i32
    return %c0_i32, %c0_i32_0 : i32, i32
  }
  func.func @transform_8(%arg0: i32) -> (i32, i32, i32) {
    %c0_i32 = arith.constant 0 : i32
    %c0_i32_0 = arith.constant 0 : i32
    %c0_i32_1 = arith.constant 0 : i32
    return %c0_i32, %arg0, %c0_i32_0 : i32, i32, i32
  }
  func.func @transform_9(%arg0: i32) -> (i32, i32) {
    %c0_i32 = arith.constant 0 : i32
    %c0_i32_0 = arith.constant 0 : i32
    return %arg0, %c0_i32 : i32, i32
  }
}

</mosaic_0001>

<llo_original>
// kernel: tpu_custom_call.1
$region0: #{tpu_custom_call.1}
  #allocation0 [shape = 'u32[]', space=smem, size = 0x4, offset = 0x4, fixed_abs, tag = 'smem constant byte address 0x4 - core index']
  #allocation1 [shape = 'u32[72,128]{1,0:T(1,128)}', space=vmem, size = 0x9000, scoped, tag = 'internal scratch']
  %s0 = inlined_call_operand.hbm [shape: f32[8,2,32], index: 0, kind: input, shape index: {}]
  %s1 = inlined_call_operand.hbm [shape: f32[32,32], index: 1, kind: input, shape index: {}]
  %s2 = inlined_call_operand.vmem [shape: f32[1,32], index: 2, kind: input, shape index: {}]
  %s3 = inlined_call_operand.hbm [shape: f32[32,32], index: 3, kind: input, shape index: {}]
  %s4 = inlined_call_operand.hbm [shape: f32[32,32], index: 4, kind: input, shape index: {}]
  %s5 = inlined_call_operand.vmem [shape: f32[1,32], index: 5, kind: input, shape index: {}]
  %s6 = inlined_call_operand.hbm [shape: f32[32,32], index: 6, kind: input, shape index: {}]
  %s7 = inlined_call_operand.vmem [shape: f32[1,32], index: 7, kind: input, shape index: {}]
  %s8 = inlined_call_operand.hbm [shape: f32[8,2,32], index: 8, kind: output, shape index: {0}]
  %s9 = inlined_call_operand.hbm [shape: f32[2,32], index: 9, kind: output, shape index: {1}]
  %10 = xla_tuple %s8, %s9
  %s11 = sld [smem:[#allocation0]]
  $region70: #{tpu_custom_call.1} parent=0
    _
  %s13 = ssub.s32 1, %s11
  %s14 = scalar_select 0, %s13, %s11
  $region1: #{tpu_custom_call.1} parent=0
    #allocation2 [shape = 'u8[8192]{0}', space=vmem, size = 0x2000, scoped, tag = 'input window, operand 0, single buffered']
    #allocation3 [shape = 's32[1]{0}', space=sflag, size = 0x4, scoped, tag = 'scoped memory for tpu_custom_call.1']
    #allocation4 [shape = 's32[1]{0}', space=sflag, size = 0x4, scoped, tag = 'scoped memory for tpu_custom_call.1']
    #allocation5 [shape = 'u8[16384]{0}', space=vmem, size = 0x4000, scoped, tag = 'input window, operand 1, single buffered']
    #allocation6 [shape = 's32[1]{0}', space=sflag, size = 0x4, scoped, tag = 'scoped memory for tpu_custom_call.1']
    #allocation7 [shape = 'u8[16384]{0}', space=vmem, size = 0x4000, scoped, tag = 'input window, operand 3, single buffered']
    #allocation8 [shape = 'u8[16384]{0}', space=vmem, size = 0x4000, scoped, tag = 'input window, operand 4, single buffered']
    #allocation9 [shape = 's32[1]{0}', space=sflag, size = 0x4, scoped, tag = 'scoped memory for tpu_custom_call.1']
    #allocation10 [shape = 'u8[16384]{0}', space=vmem, size = 0x4000, scoped, tag = 'input window, operand 6, single buffered']
    #allocation11 [shape = 'u8[8192]{0}', space=vmem, size = 0x2000, scoped, tag = 'output window, operand 0, single buffered']
    #allocation12 [shape = 'u8[1024]{0}', space=vmem, size = 0x400, scoped, tag = 'output window, operand 1, single buffered']
    #allocation13 [shape = 's32[1]{0}', space=sflag, size = 0x4, scoped, tag = 'scoped memory for tpu_custom_call.1']
    %15 = vsyncpa [#allocation3], 0
    %16 = vsyncpa [#allocation6], 0
    %17 = vsyncpa [#allocation9], 0
    %18 = vsyncpa [#allocation4], 0
    %19 = vsyncpa [#allocation13], 0
    // Predicated region
    $region2: #{tpu_custom_call.1} parent=1 // pred_check
      _
    $region3: #{tpu_custom_call.1} parent=1 // pred_check_branch
      %21 = sbr.rel (0) target = $region5
    $region4: #{tpu_custom_call.1} parent=1 // pred_region
      %23 = vsyncadd [#allocation3], 0
      %s24 = sshll.u32 %s0, 4
      %s25 = int_to_ptr.hbm [resolvable:$true] %s24
      %s26 = sshll.u32 [#allocation2], 4
      %s27 = int_to_ptr.vmem [resolvable:$true] %s26
      %32 = dma.hbm_to_vmem [thread:$0]  %s25, 256, %s27, [#allocation3], 32, 32, 2
    $region5: #{tpu_custom_call.1} parent=1 // pred_fallthru
      _
    // Predicated region
    $region6: #{tpu_custom_call.1} parent=1 // pred_check
      _
    $region7: #{tpu_custom_call.1} parent=1 // pred_check_branch
      %34 = sbr.rel (0) target = $region9
    $region8: #{tpu_custom_call.1} parent=1 // pred_region
      %36 = vsyncadd [#allocation6], 0
      %s37 = sshll.u32 %s1, 4
      %s38 = int_to_ptr.hbm [resolvable:$true] %s37
      %s39 = sshll.u32 [#allocation5], 4
      %s40 = int_to_ptr.vmem [resolvable:$true] %s39
      %45 = dma.hbm_to_vmem [thread:$0]  %s38, 512, %s40, [#allocation6], 128, 128, 8
    $region9: #{tpu_custom_call.1} parent=1 // pred_fallthru
      _
    // Predicated region
    $region10: #{tpu_custom_call.1} parent=1 // pred_check
      _
    $region11: #{tpu_custom_call.1} parent=1 // pred_check_branch
      %47 = sbr.rel (0) target = $region13
    $region12: #{tpu_custom_call.1} parent=1 // pred_region
      _
    $region13: #{tpu_custom_call.1} parent=1 // pred_fallthru
      _
    // Predicated region
    $region14: #{tpu_custom_call.1} parent=1 // pred_check
      _
    $region15: #{tpu_custom_call.1} parent=1 // pred_check_branch
      %49 = sbr.rel (0) target = $region17
    $region16: #{tpu_custom_call.1} parent=1 // pred_region
      %51 = vsyncadd [#allocation6], 0
      %s52 = sshll.u32 %s3, 4
      %s53 = int_to_ptr.hbm [resolvable:$true] %s52
      %s54 = sshll.u32 [#allocation7], 4
      %s55 = int_to_ptr.vmem [resolvable:$true] %s54
      %60 = dma.hbm_to_vmem [thread:$0]  %s53, 512, %s55, [#allocation6], 128, 128, 8
    $region17: #{tpu_custom_call.1} parent=1 // pred_fallthru
      _
    // Predicated region
    $region18: #{tpu_custom_call.1} parent=1 // pred_check
      _
    $region19: #{tpu_custom_call.1} parent=1 // pred_check_branch
      %62 = sbr.rel (0) target = $region21
    $region20: #{tpu_custom_call.1} parent=1 // pred_region
      %64 = vsyncadd [#allocation9], 0
      %s65 = sshll.u32 %s4, 4
      %s66 = int_to_ptr.hbm [resolvable:$true] %s65
      %s67 = sshll.u32 [#allocation8], 4
      %s68 = int_to_ptr.vmem [resolvable:$true] %s67
      %73 = dma.hbm_to_vmem [thread:$0]  %s66, 512, %s68, [#allocation9], 128, 128, 8
    $region21: #{tpu_custom_call.1} parent=1 // pred_fallthru
      _
    // Predicated region
    $region22: #{tpu_custom_call.1} parent=1 // pred_check
      _
    $region23: #{tpu_custom_call.1} parent=1 // pred_check_branch
      %75 = sbr.rel (0) target = $region25
    $region24: #{tpu_custom_call.1} parent=1 // pred_region
      _
    $region25: #{tpu_custom_call.1} parent=1 // pred_fallthru
      _
    // Predicated region
    $region26: #{tpu_custom_call.1} parent=1 // pred_check
      _
    $region27: #{tpu_custom_call.1} parent=1 // pred_check_branch
      %77 = sbr.rel (0) target = $region29
    $region28: #{tpu_custom_call.1} parent=1 // pred_region
      %79 = vsyncadd [#allocation9], 0
      %s80 = sshll.u32 %s6, 4
      %s81 = int_to_ptr.hbm [resolvable:$true] %s80
      %s82 = sshll.u32 [#allocation10], 4
      %s83 = int_to_ptr.vmem [resolvable:$true] %s82
      %88 = dma.hbm_to_vmem [thread:$0]  %s81, 512, %s83, [#allocation9], 128, 128, 8
    $region29: #{tpu_custom_call.1} parent=1 // pred_fallthru
      _
    // Predicated region
    $region30: #{tpu_custom_call.1} parent=1 // pred_check
      _
    $region31: #{tpu_custom_call.1} parent=1 // pred_check_branch
      %90 = sbr.rel (0) target = $region33
    $region32: #{tpu_custom_call.1} parent=1 // pred_region
      _
    $region33: #{tpu_custom_call.1} parent=1 // pred_fallthru
      _
    // Predicated region
    $region34: #{tpu_custom_call.1} parent=1 // pred_check
      _
    $region35: #{tpu_custom_call.1} parent=1 // pred_check_branch
      %92 = sbr.rel (0) target = $region37
    $region36: #{tpu_custom_call.1} parent=1 // pred_region
      %94 = dma.done [#allocation3], 256
    $region37: #{tpu_custom_call.1} parent=1 // pred_fallthru
      _
    // Predicated region
    $region38: #{tpu_custom_call.1} parent=1 // pred_check
      _
    $region39: #{tpu_custom_call.1} parent=1 // pred_check_branch
      %96 = sbr.rel (0) target = $region41
    $region40: #{tpu_custom_call.1} parent=1 // pred_region
      %98 = dma.done [#allocation6], 512
    $region41: #{tpu_custom_call.1} parent=1 // pred_fallthru
      _
    // Predicated region
    $region42: #{tpu_custom_call.1} parent=1 // pred_check
      _
    $region43: #{tpu_custom_call.1} parent=1 // pred_check_branch
      %100 = sbr.rel (0) target = $region45
    $region44: #{tpu_custom_call.1} parent=1 // pred_region
      %102 = dma.done [#allocation6], 512
    $region45: #{tpu_custom_call.1} parent=1 // pred_fallthru
      _
    // Predicated region
    $region46: #{tpu_custom_call.1} parent=1 // pred_check
      _
    $region47: #{tpu_custom_call.1} parent=1 // pred_check_branch
      %104 = sbr.rel (0) target = $region49
    $region48: #{tpu_custom_call.1} parent=1 // pred_region
      %106 = dma.done [#allocation9], 512
    $region49: #{tpu_custom_call.1} parent=1 // pred_fallthru
      _
    // Predicated region
    $region50: #{tpu_custom_call.1} parent=1 // pred_check
      _
    $region51: #{tpu_custom_call.1} parent=1 // pred_check_branch
      %108 = sbr.rel (0) target = $region53
    $region52: #{tpu_custom_call.1} parent=1 // pred_region
      %110 = dma.done [#allocation9], 512
    $region53: #{tpu_custom_call.1} parent=1 // pred_fallthru
      _
    %v111 = vld [vmem:[#allocation2] sm:$0x3]
    %v112 = vld [vmem:[#allocation2 + $0x2] sm:$0x3]
    %v113 = vld [vmem:[#allocation2 + $0x4] sm:$0x3]
    %v114 = vld [vmem:[#allocation2 + $0x6] sm:$0x3]
    %v115 = vld [vmem:[#allocation2 + $0x8] sm:$0x3]
    %v116 = vld [vmem:[#allocation2 + $0xa] sm:$0x3]
    %v117 = vld [vmem:[#allocation2 + $0xc] sm:$0x3]
    %v118 = vld [vmem:[#allocation2 + $0xe] sm:$0x3]
    %v119 = vld [vmem:[#allocation5] sm:$0xff]
    %v120 = vld [vmem:[#allocation5 + $0x8] sm:$0xff]
    %v121 = vld [vmem:[#allocation5 + $0x10] sm:$0xff]
    %v122 = vld [vmem:[#allocation5 + $0x18] sm:$0xff]
    %v123 = vld [vmem:[%s2] sm:$0x1]
    %v125 = vperm.slane %v123, 0
    %135 = vst [vmem:[#allocation1] ss:$4 sm:$0xff] %v111
    %s136 = scalar_lea.vmem [#allocation1], 1
    %137 = vst [vmem:[%s136] ss:$4 sm:$0xff] %v112
    %s138 = scalar_lea.vmem [#allocation1], 2
    %139 = vst [vmem:[%s138] ss:$4 sm:$0xff] %v113
    %s140 = scalar_lea.vmem [#allocation1], 3
    %141 = vst [vmem:[%s140] ss:$4 sm:$0xff] %v114
    %s142 = scalar_lea.vmem [#allocation1], 32
    %143 = vst [vmem:[%s142] ss:$4 sm:$0xff] %v115
    %s144 = scalar_lea.vmem [#allocation1], 33
    %145 = vst [vmem:[%s144] ss:$4 sm:$0xff] %v116
    %s146 = scalar_lea.vmem [#allocation1], 34
    %147 = vst [vmem:[%s146] ss:$4 sm:$0xff] %v117
    %s148 = scalar_lea.vmem [#allocation1], 35
    %149 = vst [vmem:[%s148] ss:$4 sm:$0xff] %v118
    %v150 = vld.sshfl [vmem:[#allocation1] sm:$0xff pattern:$0x73625140]
    %v151 = vld.sshfl [vmem:[#allocation1 + $0x20] sm:$0xff pattern:$0x73625140]
    %vm152 = vcmask 261120
    %v153 = vsel %vm152, %v150, 0
    %v155 = vsel %vm152, %v151, 0
    %157 = vmatpush.msra.mxu0 0.0
    %158 = vmatpush.msra.mxu0 0.0
    %159 = vmatpush.msra.mxu0 0.0
    %160 = vmatpush.msra.mxu0 0.0
    %161 = vmatpush.msra.mxu0 0.0
    %162 = vmatpush.msra.mxu0 0.0
    %163 = vmatpush.msra.mxu0 0.0
    %164 = vmatpush.msra.mxu0 0.0
    %165 = vmatpush.msra.mxu0 0.0
    %166 = vmatpush.msra.mxu0 0.0
    %167 = vmatpush.msra.mxu0 0.0
    %168 = vmatpush.msra.mxu0 0.0
    %169 = vmatpush.msra.mxu0 %v122
    %170 = vmatpush.msra.mxu0 %v121
    %171 = vmatpush.msra.mxu0 %v120
    %172 = vmatpush.msra.mxu0 %v119
    %173 = vmatmul.f32.gmra.mxu0 %v153
    %v174 = vpop.f32.mrf.mxu0
    %v175 = vadd.f32 %v125, %v174
    %176 = vmatmul.f32.gmra.mxu0 %v155
    %v177 = vpop.f32.mrf.mxu0
    %v178 = vadd.f32 %v125, %v177
    %179 = vdwg.mxu0
    %v182 = vrot.slane %v175, 2
    %v183 = vrot.slane %v175, 4
    %v184 = vrot.slane %v175, 6
    %v185 = vrot.slane %v178, 2
    %v186 = vrot.slane %v178, 4
    %v187 = vrot.slane %v178, 6
    %v194 = vld [vmem:[#allocation7] sm:$0xff]
    %v195 = vld [vmem:[#allocation7 + $0x8] sm:$0xff]
    %v196 = vld [vmem:[#allocation7 + $0x10] sm:$0xff]
    %v197 = vld [vmem:[#allocation7 + $0x18] sm:$0xff]
    %v199 = vsel %vm152, 0.0, 0
    %201 = vmatpush.msra.mxu0 0.0
    %202 = vmatpush.msra.mxu0 0.0
    %203 = vmatpush.msra.mxu0 0.0
    %204 = vmatpush.msra.mxu0 0.0
    %205 = vmatpush.msra.mxu0 0.0
    %206 = vmatpush.msra.mxu0 0.0
    %207 = vmatpush.msra.mxu0 0.0
    %208 = vmatpush.msra.mxu0 0.0
    %209 = vmatpush.msra.mxu0 0.0
    %210 = vmatpush.msra.mxu0 0.0
    %211 = vmatpush.msra.mxu0 0.0
    %212 = vmatpush.msra.mxu0 0.0
    %213 = vmatpush.msra.mxu0 %v197
    %214 = vmatpush.msra.mxu0 %v196
    %215 = vmatpush.msra.mxu0 %v195
    %216 = vmatpush.msra.mxu0 %v194
    %217 = vmatmul.f32.gmra.mxu0 %v199
    %v218 = vpop.f32.mrf.mxu0
    %v219 = vadd.f32 0.0, %v218
    %220 = vdwg.mxu0
    %v221 = vadd.f32 %v175, %v219
    %v222 = vtanh.pop %v221
    %vm223 = vcmask 254976
    %224 = vst.msk [vmem:[#allocation11] sm:$0x3] %vm223, %v222
    %v226 = vsel %vm152, %v222, 0
    %228 = vmatpush.msra.mxu0 0.0
    %229 = vmatpush.msra.mxu0 0.0
    %230 = vmatpush.msra.mxu0 0.0
    %231 = vmatpush.msra.mxu0 0.0
    %232 = vmatpush.msra.mxu0 0.0
    %233 = vmatpush.msra.mxu0 0.0
    %234 = vmatpush.msra.mxu0 0.0
    %235 = vmatpush.msra.mxu0 0.0
    %236 = vmatpush.msra.mxu0 0.0
    %237 = vmatpush.msra.mxu0 0.0
    %238 = vmatpush.msra.mxu0 0.0
    %239 = vmatpush.msra.mxu0 0.0
    %240 = vmatpush.msra.mxu0 %v197
    %241 = vmatpush.msra.mxu0 %v196
    %242 = vmatpush.msra.mxu0 %v195
    %243 = vmatpush.msra.mxu0 %v194
    %244 = vmatmul.f32.gmra.mxu0 %v226
    %v245 = vpop.f32.mrf.mxu0
    %v246 = vadd.f32 0.0, %v245
    %247 = vdwg.mxu0
    %v248 = vadd.f32 %v182, %v246
    %v249 = vtanh.pop %v248
    %s250 = scalar_lea.vmem [#allocation11], 2
    %251 = vst.msk [vmem:[%s250] sm:$0x3] %vm223, %v249
    %v253 = vsel %vm152, %v249, 0
    %255 = vmatpush.msra.mxu0 0.0
    %256 = vmatpush.msra.mxu0 0.0
    %257 = vmatpush.msra.mxu0 0.0
    %258 = vmatpush.msra.mxu0 0.0
    %259 = vmatpush.msra.mxu0 0.0
    %260 = vmatpush.msra.mxu0 0.0
    %261 = vmatpush.msra.mxu0 0.0
    %262 = vmatpush.msra.mxu0 0.0
    %263 = vmatpush.msra.mxu0 0.0
    %264 = vmatpush.msra.mxu0 0.0
    %265 = vmatpush.msra.mxu0 0.0
    %266 = vmatpush.msra.mxu0 0.0
    %267 = vmatpush.msra.mxu0 %v197
    %268 = vmatpush.msra.mxu0 %v196
    %269 = vmatpush.msra.mxu0 %v195
    %270 = vmatpush.msra.mxu0 %v194
    %271 = vmatmul.f32.gmra.mxu0 %v253
    %v272 = vpop.f32.mrf.mxu0
    %v273 = vadd.f32 0.0, %v272
    %274 = vdwg.mxu0
    %v275 = vadd.f32 %v183, %v273
    %v276 = vtanh.pop %v275
    %s277 = scalar_lea.vmem [#allocation11], 4
    %278 = vst.msk [vmem:[%s277] sm:$0x3] %vm223, %v276
    %v280 = vsel %vm152, %v276, 0
    %282 = vmatpush.msra.mxu0 0.0
    %283 = vmatpush.msra.mxu0 0.0
    %284 = vmatpush.msra.mxu0 0.0
    %285 = vmatpush.msra.mxu0 0.0
    %286 = vmatpush.msra.mxu0 0.0
    %287 = vmatpush.msra.mxu0 0.0
    %288 = vmatpush.msra.mxu0 0.0
    %289 = vmatpush.msra.mxu0 0.0
    %290 = vmatpush.msra.mxu0 0.0
    %291 = vmatpush.msra.mxu0 0.0
    %292 = vmatpush.msra.mxu0 0.0
    %293 = vmatpush.msra.mxu0 0.0
    %294 = vmatpush.msra.mxu0 %v197
    %295 = vmatpush.msra.mxu0 %v196
    %296 = vmatpush.msra.mxu0 %v195
    %297 = vmatpush.msra.mxu0 %v194
    %298 = vmatmul.f32.gmra.mxu0 %v280
    %v299 = vpop.f32.mrf.mxu0
    %v300 = vadd.f32 0.0, %v299
    %301 = vdwg.mxu0
    %v302 = vadd.f32 %v184, %v300
    %v303 = vtanh.pop %v302
    %s304 = scalar_lea.vmem [#allocation11], 6
    %305 = vst.msk [vmem:[%s304] sm:$0x3] %vm223, %v303
    %v307 = vsel %vm152, %v303, 0
    %309 = vmatpush.msra.mxu0 0.0
    %310 = vmatpush.msra.mxu0 0.0
    %311 = vmatpush.msra.mxu0 0.0
    %312 = vmatpush.msra.mxu0 0.0
    %313 = vmatpush.msra.mxu0 0.0
    %314 = vmatpush.msra.mxu0 0.0
    %315 = vmatpush.msra.mxu0 0.0
    %316 = vmatpush.msra.mxu0 0.0
    %317 = vmatpush.msra.mxu0 0.0
    %318 = vmatpush.msra.mxu0 0.0
    %319 = vmatpush.msra.mxu0 0.0
    %320 = vmatpush.msra.mxu0 0.0
    %321 = vmatpush.msra.mxu0 %v197
    %322 = vmatpush.msra.mxu0 %v196
    %323 = vmatpush.msra.mxu0 %v195
    %324 = vmatpush.msra.mxu0 %v194
    %325 = vmatmul.f32.gmra.mxu0 %v307
    %v326 = vpop.f32.mrf.mxu0
    %v327 = vadd.f32 0.0, %v326
    %328 = vdwg.mxu0
    %v329 = vadd.f32 %v178, %v327
    %v330 = vtanh.pop %v329
    %s331 = scalar_lea.vmem [#allocation11], 8
    %332 = vst.msk [vmem:[%s331] sm:$0x3] %vm223, %v330
    %v334 = vsel %vm152, %v330, 0
    %336 = vmatpush.msra.mxu0 0.0
    %337 = vmatpush.msra.mxu0 0.0
    %338 = vmatpush.msra.mxu0 0.0
    %339 = vmatpush.msra.mxu0 0.0
    %340 = vmatpush.msra.mxu0 0.0
    %341 = vmatpush.msra.mxu0 0.0
    %342 = vmatpush.msra.mxu0 0.0
    %343 = vmatpush.msra.mxu0 0.0
    %344 = vmatpush.msra.mxu0 0.0
    %345 = vmatpush.msra.mxu0 0.0
    %346 = vmatpush.msra.mxu0 0.0
    %347 = vmatpush.msra.mxu0 0.0
    %348 = vmatpush.msra.mxu0 %v197
    %349 = vmatpush.msra.mxu0 %v196
    %350 = vmatpush.msra.mxu0 %v195
    %351 = vmatpush.msra.mxu0 %v194
    %352 = vmatmul.f32.gmra.mxu0 %v334
    %v353 = vpop.f32.mrf.mxu0
    %v354 = vadd.f32 0.0, %v353
    %355 = vdwg.mxu0
    %v356 = vadd.f32 %v185, %v354
    %v357 = vtanh.pop %v356
    %s358 = scalar_lea.vmem [#allocation11], 10
    %359 = vst.msk [vmem:[%s358] sm:$0x3] %vm223, %v357
    %v361 = vsel %vm152, %v357, 0
    %363 = vmatpush.msra.mxu0 0.0
    %364 = vmatpush.msra.mxu0 0.0
    %365 = vmatpush.msra.mxu0 0.0
    %366 = vmatpush.msra.mxu0 0.0
    %367 = vmatpush.msra.mxu0 0.0
    %368 = vmatpush.msra.mxu0 0.0
    %369 = vmatpush.msra.mxu0 0.0
    %370 = vmatpush.msra.mxu0 0.0
    %371 = vmatpush.msra.mxu0 0.0
    %372 = vmatpush.msra.mxu0 0.0
    %373 = vmatpush.msra.mxu0 0.0
    %374 = vmatpush.msra.mxu0 0.0
    %375 = vmatpush.msra.mxu0 %v197
    %376 = vmatpush.msra.mxu0 %v196
    %377 = vmatpush.msra.mxu0 %v195
    %378 = vmatpush.msra.mxu0 %v194
    %379 = vmatmul.f32.gmra.mxu0 %v361
    %v380 = vpop.f32.mrf.mxu0
    %v381 = vadd.f32 0.0, %v380
    %382 = vdwg.mxu0
    %v383 = vadd.f32 %v186, %v381
    %v384 = vtanh.pop %v383
    %s385 = scalar_lea.vmem [#allocation11], 12
    %386 = vst.msk [vmem:[%s385] sm:$0x3] %vm223, %v384
    %v388 = vsel %vm152, %v384, 0
    %390 = vmatpush.msra.mxu0 0.0
    %391 = vmatpush.msra.mxu0 0.0
    %392 = vmatpush.msra.mxu0 0.0
    %393 = vmatpush.msra.mxu0 0.0
    %394 = vmatpush.msra.mxu0 0.0
    %395 = vmatpush.msra.mxu0 0.0
    %396 = vmatpush.msra.mxu0 0.0
    %397 = vmatpush.msra.mxu0 0.0
    %398 = vmatpush.msra.mxu0 0.0
    %399 = vmatpush.msra.mxu0 0.0
    %400 = vmatpush.msra.mxu0 0.0
    %401 = vmatpush.msra.mxu0 0.0
    %402 = vmatpush.msra.mxu0 %v197
    %403 = vmatpush.msra.mxu0 %v196
    %404 = vmatpush.msra.mxu0 %v195
    %405 = vmatpush.msra.mxu0 %v194
    %406 = vmatmul.f32.gmra.mxu0 %v388
    %v407 = vpop.f32.mrf.mxu0
    %v408 = vadd.f32 0.0, %v407
    %409 = vdwg.mxu0
    %v410 = vadd.f32 %v187, %v408
    %v411 = vtanh.pop %v410
    %s412 = scalar_lea.vmem [#allocation11], 14
    %413 = vst.msk [vmem:[%s412] sm:$0x3] %vm223, %v411
    %v414 = vld [vmem:[#allocation8] sm:$0xff]
    %v415 = vld [vmem:[#allocation8 + $0x8] sm:$0xff]
    %v416 = vld [vmem:[#allocation8 + $0x10] sm:$0xff]
    %v417 = vld [vmem:[#allocation8 + $0x18] sm:$0xff]
    %v418 = vld [vmem:[%s5] sm:$0x1]
    %v420 = vperm.slane %v418, 0
    %v423 = vsel %vm152, %v411, 0
    %425 = vmatpush.msra.mxu0 0.0
    %426 = vmatpush.msra.mxu0 0.0
    %427 = vmatpush.msra.mxu0 0.0
    %428 = vmatpush.msra.mxu0 0.0
    %429 = vmatpush.msra.mxu0 0.0
    %430 = vmatpush.msra.mxu0 0.0
    %431 = vmatpush.msra.mxu0 0.0
    %432 = vmatpush.msra.mxu0 0.0
    %433 = vmatpush.msra.mxu0 0.0
    %434 = vmatpush.msra.mxu0 0.0
    %435 = vmatpush.msra.mxu0 0.0
    %436 = vmatpush.msra.mxu0 0.0
    %437 = vmatpush.msra.mxu0 %v417
    %438 = vmatpush.msra.mxu0 %v416
    %439 = vmatpush.msra.mxu0 %v415
    %440 = vmatpush.msra.mxu0 %v414
    %441 = vmatmul.f32.gmra.mxu0 %v423
    %v442 = vpop.f32.mrf.mxu0
    %v443 = vadd.f32 %v420, %v442
    %444 = vdwg.mxu0
    %v445 = vmax.f32 %v443, 0.0
    %v446 = vld [vmem:[#allocation10] sm:$0xff]
    %v447 = vld [vmem:[#allocation10 + $0x8] sm:$0xff]
    %v448 = vld [vmem:[#allocation10 + $0x10] sm:$0xff]
    %v449 = vld [vmem:[#allocation10 + $0x18] sm:$0xff]
    %v450 = vld [vmem:[%s7] sm:$0x1]
    %v452 = vperm.slane %v450, 0
    %v455 = vsel %vm152, %v445, 0
    %457 = vmatpush.msra.mxu0 0.0
    %458 = vmatpush.msra.mxu0 0.0
    %459 = vmatpush.msra.mxu0 0.0
    %460 = vmatpush.msra.mxu0 0.0
    %461 = vmatpush.msra.mxu0 0.0
    %462 = vmatpush.msra.mxu0 0.0
    %463 = vmatpush.msra.mxu0 0.0
    %464 = vmatpush.msra.mxu0 0.0
    %465 = vmatpush.msra.mxu0 0.0
    %466 = vmatpush.msra.mxu0 0.0
    %467 = vmatpush.msra.mxu0 0.0
    %468 = vmatpush.msra.mxu0 0.0
    %469 = vmatpush.msra.mxu0 %v449
    %470 = vmatpush.msra.mxu0 %v448
    %471 = vmatpush.msra.mxu0 %v447
    %472 = vmatpush.msra.mxu0 %v446
    %473 = vmatmul.f32.gmra.mxu0 %v455
    %v474 = vpop.f32.mrf.mxu0
    %v475 = vadd.f32 %v452, %v474
    %476 = vdwg.mxu0
    %v477 = vtanh.pop %v475
    %478 = vst.msk [vmem:[#allocation12] sm:$0x3] %vm223, %v477
    // Predicated region
    $region54: #{tpu_custom_call.1} parent=1 // pred_check
      _
    $region55: #{tpu_custom_call.1} parent=1 // pred_check_branch
      %480 = sbr.rel (0) target = $region57
    $region56: #{tpu_custom_call.1} parent=1 // pred_region
      %482 = vsyncadd [#allocation4], 0
      %s483 = sshll.u32 [#allocation11], 4
      %s484 = int_to_ptr.vmem [resolvable:$true] %s483
      %s485 = sshll.u32 %s8, 4
      %s486 = int_to_ptr.hbm [resolvable:$true] %s485
      %491 = dma.vmem_to_hbm [thread:$0]  %s484, 256, %s486, [#allocation4], 32, 32, 2
    $region57: #{tpu_custom_call.1} parent=1 // pred_fallthru
      _
    // Predicated region
    $region58: #{tpu_custom_call.1} parent=1 // pred_check
      _
    $region59: #{tpu_custom_call.1} parent=1 // pred_check_branch
      %493 = sbr.rel (0) target = $region61
    $region60: #{tpu_custom_call.1} parent=1 // pred_region
      %495 = vsyncadd [#allocation13], 0
      %s497 = sshll.u32 [#allocation12], 4
      %s498 = int_to_ptr.vmem [resolvable:$true] %s497
      %s499 = sshll.u32 %s9, 4
      %s500 = int_to_ptr.hbm [resolvable:$true] %s499
      %502 = dma.vmem_to_hbm [thread:$0]  %s498, 32, %s500, [#allocation13]
    $region61: #{tpu_custom_call.1} parent=1 // pred_fallthru
      _
    // Predicated region
    $region62: #{tpu_custom_call.1} parent=1 // pred_check
      _
    $region63: #{tpu_custom_call.1} parent=1 // pred_check_branch
      %504 = sbr.rel (0) target = $region65
    $region64: #{tpu_custom_call.1} parent=1 // pred_region
      %506 = dma.done [#allocation4], 256
    $region65: #{tpu_custom_call.1} parent=1 // pred_fallthru
      _
    // Predicated region
    $region66: #{tpu_custom_call.1} parent=1 // pred_check
      _
    $region67: #{tpu_custom_call.1} parent=1 // pred_check_branch
      %508 = sbr.rel (0) target = $region69
    $region68: #{tpu_custom_call.1} parent=1 // pred_region
      %510 = dma.done [#allocation13], 32
    $region69: #{tpu_custom_call.1} parent=1 // pred_fallthru
      _
    %511 = vsyncpa [#allocation3], 1
    %512 = vsyncpa [#allocation6], 1
    %513 = vsyncpa [#allocation9], 1
    %514 = vsyncpa [#allocation4], 1
    %515 = vsyncpa [#allocation13], 1

</llo_original>
